<compile_context>
chip_gen: v6e
topology: v6e:2x2x1
jax: 0.10.0
libtpu: 0.0.40
codegen_flags: <defaults>
</compile_context>

<pallas_src>
import jax
import jax.numpy as jnp
from jax.experimental import pallas as pl
from jax.experimental.pallas import tpu as pltpu

LANE = 128
_MAX_DB_FOOTPRINT_BYTES = 32 << 20   # double-buffered budget for the 4 tiles (v7x-safe)
_VMEM_HEADROOM_BYTES = 16 << 20      # compiler scratch / pipeline slack


def _round_up(n, m):
    return ((n + m - 1) // m) * m


def _sublane_multiple(dtype):
    """Rows per native vreg tile: 8 (32-bit), 16 (16-bit), 32 (8-bit)."""
    return max(8, 32 // jnp.dtype(dtype).itemsize)


def _x_update_kernel(scal_ref, x_ref, y_ref, m_ref, o_ref):
    # scal_ref holds [rho, 4*rho, 0.5/rho] precomputed on the host.
    rho = scal_ref[0]
    four_rho = scal_ref[1]
    half_inv_rho = scal_ref[2]

    x = x_ref[...].astype(jnp.float32)
    y = y_ref[...].astype(jnp.float32)
    m = m_ref[...].astype(jnp.float32)

    t1 = rho * x - m
    out = half_inv_rho * (t1 + jnp.sqrt(t1 * t1 + four_rho * y))
    o_ref[...] = out.astype(o_ref.dtype)


def _x_update_jnp(xf, yf, mf, scal, out_dtype):
    """Plain-jnp path for the <128-element flat remainder (and tiny inputs)."""
    t1 = scal[0] * xf.astype(jnp.float32) - mf.astype(jnp.float32)
    out = scal[2] * (t1 + jnp.sqrt(t1 * t1 + scal[1] * yf.astype(jnp.float32)))
    return out.astype(out_dtype)


def x_update(x, y, rho1, M, *, block_rows=8192):
    """Pallas implementation of X_Update.forward(x, y, rho1, M).

    x, y, M: arrays of identical shape (any rank), floating dtypes.
    rho1:    scalar (python float / NumPy / JAX scalar).
    """
    assert x.shape == y.shape == M.shape, "x, y, M must share a shape"
    orig_shape = x.shape
    out_dtype = jnp.result_type(x.dtype, y.dtype, M.dtype)

    # Scalars precomputed once: [rho, 4*rho, 0.5/rho].
    rho = jnp.asarray(rho1, dtype=jnp.float32)
    scal = jnp.stack([rho, 4.0 * rho, 0.5 / rho])

    total = int(x.size)
    tail = total % LANE          # <128-element flat remainder handled outside the kernel
    bulk = total - tail
    rows = bulk // LANE

    xf, yf, mf = x.reshape(-1), y.reshape(-1), M.reshape(-1)

    if rows == 0:
        # Tensor smaller than one 128-lane row: a launch is pure overhead.
        return _x_update_jnp(xf, yf, mf, scal, out_dtype).reshape(orig_shape)

    # Zero-copy row-major reshape of the bulk into lane-dense (rows, 128) slabs.
    x2 = (xf[:bulk] if tail else xf).reshape(rows, LANE)
    y2 = (yf[:bulk] if tail else yf).reshape(rows, LANE)
    m2 = (mf[:bulk] if tail else mf).reshape(rows, LANE)

    dtypes = (x.dtype, y.dtype, M.dtype, out_dtype)
    sub = max(_sublane_multiple(d) for d in dtypes)                 # dtype-aware sublane step
    row_bytes = LANE * sum(jnp.dtype(d).itemsize for d in dtypes)   # 4 tiles, per slab row

    if rows <= sub:
        # Full-extent block: the (8,128) divisibility requirement is waived.
        block_rows_eff = rows
    else:
        # Largest block that (a) fits the double-buffered VMEM budget and
        # (b) keeps >= 4 grid steps so v7x can split the parallel axis across
        # both TensorCores.
        max_rows_vmem = max(sub, (_MAX_DB_FOOTPRINT_BYTES // (2 * row_bytes)) // sub * sub)
        quarter_rows = _round_up(-(-rows // 4), sub)
        block_rows_eff = max(sub, min(_round_up(block_rows, sub), max_rows_vmem, quarter_rows))

    grid = (pl.cdiv(rows, block_rows_eff),)   # partial last block auto-masked by Pallas
    tile = pl.BlockSpec((block_rows_eff, LANE), lambda i: (i, 0))

    footprint = 2 * block_rows_eff * row_bytes
    vmem_limit = int(min(footprint + _VMEM_HEADROOM_BYTES, 56 << 20))

    cost = pl.CostEstimate(
        flops=7 * total,
        transcendentals=total,
        bytes_accessed=total * sum(jnp.dtype(d).itemsize for d in dtypes),
    )

    out2 = pl.pallas_call(
        _x_update_kernel,
        out_shape=jax.ShapeDtypeStruct((rows, LANE), out_dtype),
        grid_spec=pltpu.PrefetchScalarGridSpec(
            num_scalar_prefetch=0,
            grid=grid,
            in_specs=[
                pl.BlockSpec(memory_space=pltpu.SMEM),  # [rho, 4rho, 0.5/rho]
                tile,                                   # x
                tile,                                   # y
                tile,                                   # M
            ],
            out_specs=tile,
        ),
        compiler_params=pltpu.CompilerParams(
            dimension_semantics=("parallel",),
            vmem_limit_bytes=vmem_limit,
        ),
        cost_estimate=cost,
    )(scal, x2, y2, m2)

    out_flat = out2.reshape(-1)
    if tail:
        out_tail = _x_update_jnp(xf[bulk:], yf[bulk:], mf[bulk:], scal, out_dtype)
        out_flat = jnp.concatenate([out_flat, out_tail])
    return out_flat.reshape(orig_shape)


def _x_update_ref(x, y, rho1, M):
    """Pure-JAX reference matching the PyTorch forward exactly."""
    t1 = rho1 * x - M
    return 0.5 * (1.0 / rho1) * (t1 + jnp.sqrt(t1 ** 2 + 4.0 * y * rho1))


if __name__ == "__main__":
    key = jax.random.PRNGKey(0)
    kx, ky, km = jax.random.split(key, 3)

    # Small NCHW shape consistent with the denoiser usage.
    N, C, H, W = 2, 4, 16, 16
    x = jax.random.normal(kx, (N, C, H, W), dtype=jnp.float32)
    # y plays the role of observed counts (Poisson-like): keep nonnegative so
    # the sqrt argument stays in-domain, as in the intended usage.
    y = jax.random.uniform(ky, (N, C, H, W), dtype=jnp.float32) * 4.0
    M = jax.random.normal(km, (N, C, H, W), dtype=jnp.float32)
    rho1 = 1.5

    out = jax.block_until_ready(x_update(x, y, rho1, M))
    ref = jax.block_until_ready(_x_update_ref(x, y, rho1, M))
    assert out.shape == x.shape and out.dtype == x.dtype
    max_err = float(jnp.max(jnp.abs(out - ref)))
    assert max_err < 1e-5, f"mismatch vs reference: {max_err}"

    # Ragged case (total % 128 != 0) exercises the no-pad bulk + jnp tail path.
    k2x, k2y, k2m = jax.random.split(jax.random.PRNGKey(1), 3)
    shp = (3, 5, 7, 9)
    xr = jax.random.normal(k2x, shp, dtype=jnp.float32)
    yr = jax.random.uniform(k2y, shp, dtype=jnp.float32) * 4.0
    mr = jax.random.normal(k2m, shp, dtype=jnp.float32)
    outr = jax.block_until_ready(x_update(xr, yr, rho1, mr))
    refr = jax.block_until_ready(_x_update_ref(xr, yr, rho1, mr))
    assert outr.shape == shp
    assert float(jnp.max(jnp.abs(outr - refr))) < 1e-5, "ragged-tail mismatch"

    print("KERNEL_OK")
</pallas_src>

<mosaic_0001>
module attributes {stable_mosaic.version = 11 : i64} {
  func.func @_x_update_kernel(%arg0: i32, %arg1: memref<3xf32, #tpu.memory_space<smem>>, %arg2: memref<8x128xf32, #tpu.memory_space<vmem>>, %arg3: memref<8x128xf32, #tpu.memory_space<vmem>>, %arg4: memref<8x128xf32, #tpu.memory_space<vmem>>, %arg5: memref<8x128xf32, #tpu.memory_space<vmem>>) attributes {dimension_semantics = [#tpu.dimension_semantics<parallel>], iteration_bounds = array<i64: 2>, scalar_prefetch = 0 : i64, scratch_operands = 0 : i64, tpu.core_type = #tpu.core_type<tc>, window_params = [{transform_indices = @transform_0, window_bounds = array<i64: 3>}, {transform_indices = @transform_1, window_bounds = array<i64: 8, 128>}, {transform_indices = @transform_2, window_bounds = array<i64: 8, 128>}, {transform_indices = @transform_3, window_bounds = array<i64: 8, 128>}, {transform_indices = @transform_4, window_bounds = array<i64: 8, 128>}]} {
    %c0 = arith.constant 0 : index
    %0 = memref.load %arg1[%c0] : memref<3xf32, #tpu.memory_space<smem>>
    %c1 = arith.constant 1 : index
    %1 = memref.load %arg1[%c1] : memref<3xf32, #tpu.memory_space<smem>>
    %c2 = arith.constant 2 : index
    %2 = memref.load %arg1[%c2] : memref<3xf32, #tpu.memory_space<smem>>
    %c0_0 = arith.constant 0 : index
    %c0_1 = arith.constant 0 : index
    %3 = vector.load %arg2[%c0_0, %c0_1] : memref<8x128xf32, #tpu.memory_space<vmem>>, vector<8x128xf32>
    %c0_2 = arith.constant 0 : index
    %c0_3 = arith.constant 0 : index
    %4 = vector.load %arg3[%c0_2, %c0_3] : memref<8x128xf32, #tpu.memory_space<vmem>>, vector<8x128xf32>
    %c0_4 = arith.constant 0 : index
    %c0_5 = arith.constant 0 : index
    %5 = vector.load %arg4[%c0_4, %c0_5] : memref<8x128xf32, #tpu.memory_space<vmem>>, vector<8x128xf32>
    %6 = vector.broadcast %0 : f32 to vector<8x128xf32>
    %7 = arith.mulf %6, %3 : vector<8x128xf32>
    %8 = arith.subf %7, %5 : vector<8x128xf32>
    %9 = arith.mulf %8, %8 : vector<8x128xf32>
    %10 = vector.broadcast %1 : f32 to vector<8x128xf32>
    %11 = arith.mulf %10, %4 : vector<8x128xf32>
    %12 = arith.addf %9, %11 : vector<8x128xf32>
    %13 = math.sqrt %12 : vector<8x128xf32>
    %14 = arith.addf %8, %13 : vector<8x128xf32>
    %15 = vector.broadcast %2 : f32 to vector<8x128xf32>
    %16 = arith.mulf %15, %14 : vector<8x128xf32>
    %c0_6 = arith.constant 0 : index
    %c0_7 = arith.constant 0 : index
    %17 = vector.load %arg5[%c0_6, %c0_7] : memref<8x128xf32, #tpu.memory_space<vmem>>, vector<8x128xf32>
    tpu.vector_store %arg5[%c0_6, %c0_7], %16 {strides = array<i32>} : memref<8x128xf32, #tpu.memory_space<vmem>>, vector<8x128xf32>,
    return
  }
  func.func @transform_0(%arg0: i32) -> i32 {
    %c0_i32 = arith.constant 0 : i32
    %c0_i32_0 = arith.constant 0 : i32
    return %c0_i32 : i32
  }
  func.func @transform_1(%arg0: i32) -> (i32, i32) {
    %c0_i32 = arith.constant 0 : i32
    %c0_i32_0 = arith.constant 0 : i32
    return %arg0, %c0_i32 : i32, i32
  }
  func.func @transform_2(%arg0: i32) -> (i32, i32) {
    %c0_i32 = arith.constant 0 : i32
    %c0_i32_0 = arith.constant 0 : i32
    return %arg0, %c0_i32 : i32, i32
  }
  func.func @transform_3(%arg0: i32) -> (i32, i32) {
    %c0_i32 = arith.constant 0 : i32
    %c0_i32_0 = arith.constant 0 : i32
    return %arg0, %c0_i32 : i32, i32
  }
  func.func @transform_4(%arg0: i32) -> (i32, i32) {
    %c0_i32 = arith.constant 0 : i32
    %c0_i32_0 = arith.constant 0 : i32
    return %arg0, %c0_i32 : i32, i32
  }
}

</mosaic_0001>

<llo_original>
// kernel: tpu_custom_call.1
$region0: #{tpu_custom_call.1}
  #allocation0 [shape = 'u32[]', space=smem, size = 0x4, offset = 0x4, fixed_abs, tag = 'smem constant byte address 0x4 - core index']
  #allocation1 [shape = 'u32[144,128]{1,0:T(1,128)}', space=vmem, size = 0x12000, scoped, tag = 'internal scratch']
  %s0 = inlined_call_operand.hbm [shape: f32[3], index: 0, kind: input, shape index: {}]
  %s1 = inlined_call_operand.hbm [shape: f32[16,128], index: 1, kind: input, shape index: {}]
  %s2 = inlined_call_operand.hbm [shape: f32[16,128], index: 2, kind: input, shape index: {}]
  %s3 = inlined_call_operand.hbm [shape: f32[16,128], index: 3, kind: input, shape index: {}]
  %s4 = inlined_call_operand.hbm [shape: f32[16,128], index: 4, kind: output, shape index: {}]
  %s5 = sld [smem:[#allocation0]]
  $region65: #{tpu_custom_call.1} parent=0
    _
  %s7 = ssub.s32 1, %s5
  %s8 = scalar_select 0, %s7, %s5
  $region1: #{tpu_custom_call.1} parent=0
    #allocation2 [shape = 'u8[512]{0}', space=smem, size = 0x200, scoped, tag = 'input window, operand 0, single buffered']
    #allocation3 [shape = 's32[2]{0}', space=sflag, size = 0x8, scoped, tag = 'scoped memory for tpu_custom_call.1']
    #allocation4 [shape = 's32[2]{0}', space=sflag, size = 0x8, scoped, tag = 'scoped memory for tpu_custom_call.1']
    #allocation5 [shape = 's32[2]{0}', space=sflag, size = 0x8, scoped, tag = 'scoped memory for tpu_custom_call.1']
    #allocation6 [shape = 'u8[8192]{0}', space=vmem, size = 0x2000, scoped, tag = 'input window, operand 1']
    #allocation7 [shape = 'u8[8192]{0}', space=vmem, size = 0x2000, scoped, tag = 'input window, operand 2']
    #allocation8 [shape = 's32[2]{0}', space=sflag, size = 0x8, scoped, tag = 'scoped memory for tpu_custom_call.1']
    #allocation9 [shape = 'u8[8192]{0}', space=vmem, size = 0x2000, scoped, tag = 'input window, operand 3']
    #allocation10 [shape = 'u8[8192]{0}', space=vmem, size = 0x2000, scoped, tag = 'output window, operand 0']
    %9 = vsyncpa [#allocation5], 0
    %10 = vsyncpa [#allocation3], 0
    %s11 = scalar_lea.sflag [#allocation3], 1
    %12 = vsyncpa %s11, 0
    %13 = vsyncpa [#allocation8], 0
    %s14 = scalar_lea.sflag [#allocation8], 1
    %15 = vsyncpa %s14, 0
    %16 = vsyncpa [#allocation4], 0
    %s17 = scalar_lea.sflag [#allocation4], 1
    %18 = vsyncpa %s17, 0
    loop: start=0, step=1, limit=4
    $region2: #{tpu_custom_call.1} parent=1 // loop_pre_header
      _
    $region3: #{tpu_custom_call.1} parent=1 // loop_header
      %s20 = sphi 0, %s24
      %p21 = scmp.ge.s32.totalorder %s20, 4
      %s28 = sphi 0, %s28
      %s30 = sphi 0, %s28
      %s31 = sphi 0, %s30
      %s45 = sphi 0, %s31
      %s51 = sphi 0, %s53
      %s54 = sphi 0, %s51
      %s55 = sphi 0, %s54
      %s71 = sphi 0, %s55
      %s77 = sphi 0, %s79
      %s80 = sphi 0, %s77
      %s81 = sphi 0, %s80
      %s97 = sphi 0, %s81
      %s103 = sphi 0, %s105
      %s106 = sphi 0, %s103
      %s107 = sphi 0, %s106
      %s123 = sphi 0, %s107
      %s129 = sphi 0, %s131
      %s132 = sphi 0, %s129
      %s133 = sphi 0, %s132
      %s149 = sphi 0, %s133
    $region4: #{tpu_custom_call.1} parent=1 // loop_header_branch
      %23 = sbr.rel (%p21) target = $region8
    $region5: #{tpu_custom_call.1} parent=1 // loop_body
      %s25 = ssub.s32 %s20, 1
      %s26 = ssub.s32 %s20, 2
      %s27 = sadd.s32 %s20, 1
      %s29 = sadd.s32 %s28, 1
      %p32 = scmp.eq.s32.totalorder %s20, 1
      %p33 = scmp.ne.s32.totalorder %s28, %s30
      %p34 = scmp.eq.s32.totalorder %s20, 0
      %p35 = por %p33, %p34
      %p36 = scmp.ne.s32.totalorder %s28, %s30
      %p37 = scmp.eq.s32.totalorder %s25, 1
      %p38 = por %p36, %p37
      %p39 = scmp.ne.s32.totalorder %s30, %s31
      %p40 = scmp.eq.s32.totalorder %s25, 0
      %p41 = por %p39, %p40
      %p42 = scmp.ne.s32.totalorder %s30, %s31
      %p43 = scmp.eq.s32.totalorder %s26, 1
      %p44 = por %p42, %p43
      %p46 = scmp.ne.s32.totalorder %s31, %s45
      %p47 = scmp.eq.s32.totalorder %s26, 0
      %p48 = por %p46, %p47
      %s49 = ssub.s32 %s20, %s27
      %p50 = scmp.eq.s32.totalorder %s49, 0
      %s52 = sadd.s32 %s51, 1
      %s53 = scalar_select %p50, %s51, %s52
      %p56 = pneg %p50
      %p57 = scmp.eq.s32.totalorder %s20, 1
      %p58 = por %p56, %p57
      %p59 = scmp.ne.s32.totalorder %s51, %s54
      %p60 = scmp.eq.s32.totalorder %s20, 0
      %p61 = por %p59, %p60
      %p62 = scmp.ne.s32.totalorder %s51, %s54
      %p63 = scmp.eq.s32.totalorder %s25, 1
      %p64 = por %p62, %p63
      %p65 = scmp.ne.s32.totalorder %s54, %s55
      %p66 = scmp.eq.s32.totalorder %s25, 0
      %p67 = por %p65, %p66
      %p68 = scmp.ne.s32.totalorder %s54, %s55
      %p69 = scmp.eq.s32.totalorder %s26, 1
      %p70 = por %p68, %p69
      %p72 = scmp.ne.s32.totalorder %s55, %s71
      %p73 = scmp.eq.s32.totalorder %s26, 0
      %p74 = por %p72, %p73
      %s75 = ssub.s32 %s20, %s27
      %p76 = scmp.eq.s32.totalorder %s75, 0
      %s78 = sadd.s32 %s77, 1
      %s79 = scalar_select %p76, %s77, %s78
      %p82 = pneg %p76
      %p83 = scmp.eq.s32.totalorder %s20, 1
      %p84 = por %p82, %p83
      %p85 = scmp.ne.s32.totalorder %s77, %s80
      %p86 = scmp.eq.s32.totalorder %s20, 0
      %p87 = por %p85, %p86
      %p88 = scmp.ne.s32.totalorder %s77, %s80
      %p89 = scmp.eq.s32.totalorder %s25, 1
      %p90 = por %p88, %p89
      %p91 = scmp.ne.s32.totalorder %s80, %s81
      %p92 = scmp.eq.s32.totalorder %s25, 0
      %p93 = por %p91, %p92
      %p94 = scmp.ne.s32.totalorder %s80, %s81
      %p95 = scmp.eq.s32.totalorder %s26, 1
      %p96 = por %p94, %p95
      %p98 = scmp.ne.s32.totalorder %s81, %s97
      %p99 = scmp.eq.s32.totalorder %s26, 0
      %p100 = por %p98, %p99
      %s101 = ssub.s32 %s20, %s27
      %p102 = scmp.eq.s32.totalorder %s101, 0
      %s104 = sadd.s32 %s103, 1
      %s105 = scalar_select %p102, %s103, %s104
      %p108 = pneg %p102
      %p109 = scmp.eq.s32.totalorder %s20, 1
      %p110 = por %p108, %p109
      %p111 = scmp.ne.s32.totalorder %s103, %s106
      %p112 = scmp.eq.s32.totalorder %s20, 0
      %p113 = por %p111, %p112
      %p114 = scmp.ne.s32.totalorder %s103, %s106
      %p115 = scmp.eq.s32.totalorder %s25, 1
      %p116 = por %p114, %p115
      %p117 = scmp.ne.s32.totalorder %s106, %s107
      %p118 = scmp.eq.s32.totalorder %s25, 0
      %p119 = por %p117, %p118
      %p120 = scmp.ne.s32.totalorder %s106, %s107
      %p121 = scmp.eq.s32.totalorder %s26, 1
      %p122 = por %p120, %p121
      %p124 = scmp.ne.s32.totalorder %s107, %s123
      %p125 = scmp.eq.s32.totalorder %s26, 0
      %p126 = por %p124, %p125
      %s127 = ssub.s32 %s20, %s27
      %p128 = scmp.eq.s32.totalorder %s127, 0
      %s130 = sadd.s32 %s129, 1
      %s131 = scalar_select %p128, %s129, %s130
      %p134 = pneg %p128
      %p135 = scmp.eq.s32.totalorder %s20, 1
      %p136 = por %p134, %p135
      %p137 = scmp.ne.s32.totalorder %s129, %s132
      %p138 = scmp.eq.s32.totalorder %s20, 0
      %p139 = por %p137, %p138
      %p140 = scmp.ne.s32.totalorder %s129, %s132
      %p141 = scmp.eq.s32.totalorder %s25, 1
      %p142 = por %p140, %p141
      %p143 = scmp.ne.s32.totalorder %s132, %s133
      %p144 = scmp.eq.s32.totalorder %s25, 0
      %p145 = por %p143, %p144
      %p146 = scmp.ne.s32.totalorder %s132, %s133
      %p147 = scmp.eq.s32.totalorder %s26, 1
      %p148 = por %p146, %p147
      %p150 = scmp.ne.s32.totalorder %s133, %s149
      %p151 = scmp.eq.s32.totalorder %s26, 0
      %p152 = por %p150, %p151
      %p153 = scmp.le.s32.totalorder 1, %s20
      %p154 = scmp.lt.s32.totalorder %s20, 3
      %p155 = pnand %p153, %p154
      %p156 = pneg %p155
      // Predicated region
      $region9: #{tpu_custom_call.1} parent=5 // pred_check
        _
      $region10: #{tpu_custom_call.1} parent=5 // pred_check_branch
        %158 = sbr.rel (%p155) target = $region12
      $region11: #{tpu_custom_call.1} parent=5 // pred_region
        %s159 = ssub.s32 %s20, 1
        // Predicated region
        $region13: #{tpu_custom_call.1} parent=11 // pred_check
          %p160 = pneg %p41
        $region14: #{tpu_custom_call.1} parent=11 // pred_check_branch
          %162 = sbr.rel (%p160) target = $region16
        $region15: #{tpu_custom_call.1} parent=11 // pred_region
          %s164 = ssub.s32 16, 16
          %165 = vsyncadd [#allocation5], %s164
          %168 = dma.hbm_to_smem %s0, 16, [#allocation2], [#allocation5]
        $region16: #{tpu_custom_call.1} parent=11 // pred_fallthru
          _
      $region12: #{tpu_custom_call.1} parent=5 // pred_fallthru
        _
      %p169 = scmp.lt.s32.totalorder %s20, 2
      // Predicated region
      $region17: #{tpu_custom_call.1} parent=5 // pred_check
        %p170 = pneg %p169
      $region18: #{tpu_custom_call.1} parent=5 // pred_check_branch
        %172 = sbr.rel (%p170) target = $region20
      $region19: #{tpu_custom_call.1} parent=5 // pred_region
        // Predicated region
        $region21: #{tpu_custom_call.1} parent=19 // pred_check
          %p173 = pneg %p61
        $region22: #{tpu_custom_call.1} parent=19 // pred_check_branch
          %175 = sbr.rel (%p173) target = $region24
        $region23: #{tpu_custom_call.1} parent=19 // pred_region
          %s176 = sand.u32 %s51, 1
          %s177 = scalar_lea.sflag [#allocation3], %s176
          %s178 = sand.u32 %s51, 1
          %s179 = smul.addr %s178, 8
          %s180 = scalar_lea.vmem [#allocation6], %s179
          %s182 = ssub.s32 128, 128
          %183 = vsyncadd %s177, %s182
          %s184 = smul.addr %s20, 128
          %s185 = scalar_lea.hbm %s1, %s184
          %s187 = sshll.u32 %s180, 4
          %s188 = int_to_ptr.vmem [resolvable:$true] %s187
          %190 = dma.hbm_to_vmem [thread:$0]  %s185, 128, %s188, %s177
        $region24: #{tpu_custom_call.1} parent=19 // pred_fallthru
          _
        // Predicated region
        $region25: #{tpu_custom_call.1} parent=19 // pred_check
          %p191 = pneg %p87
        $region26: #{tpu_custom_call.1} parent=19 // pred_check_branch
          %193 = sbr.rel (%p191) target = $region28
        $region27: #{tpu_custom_call.1} parent=19 // pred_region
          %s194 = sand.u32 %s20, 1
          %s195 = scalar_lea.sflag [#allocation8], %s194
          %s196 = sand.u32 %s77, 1
          %s197 = smul.addr %s196, 8
          %s198 = scalar_lea.vmem [#allocation7], %s197
          %s200 = ssub.s32 128, 128
          %201 = vsyncadd %s195, %s200
          %s202 = smul.addr %s20, 128
          %s203 = scalar_lea.hbm %s2, %s202
          %s205 = sshll.u32 %s198, 4
          %s206 = int_to_ptr.vmem [resolvable:$true] %s205
          %208 = dma.hbm_to_vmem [thread:$0]  %s203, 128, %s206, %s195
        $region28: #{tpu_custom_call.1} parent=19 // pred_fallthru
          _
        // Predicated region
        $region29: #{tpu_custom_call.1} parent=19 // pred_check
          %p209 = pneg %p113
        $region30: #{tpu_custom_call.1} parent=19 // pred_check_branch
          %211 = sbr.rel (%p209) target = $region32
        $region31: #{tpu_custom_call.1} parent=19 // pred_region
          %s212 = sand.u32 %s20, 1
          %s213 = scalar_lea.sflag [#allocation8], %s212
          %s214 = sand.u32 %s103, 1
          %s215 = smul.addr %s214, 8
          %s216 = scalar_lea.vmem [#allocation9], %s215
          %s218 = ssub.s32 128, 128
          %219 = vsyncadd %s213, %s218
          %s220 = smul.addr %s20, 128
          %s221 = scalar_lea.hbm %s3, %s220
          %s223 = sshll.u32 %s216, 4
          %s224 = int_to_ptr.vmem [resolvable:$true] %s223
          %226 = dma.hbm_to_vmem [thread:$0]  %s221, 128, %s224, %s213
        $region32: #{tpu_custom_call.1} parent=19 // pred_fallthru
          _
      $region20: #{tpu_custom_call.1} parent=5 // pred_fallthru
        _
      %p227 = scmp.le.s32.totalorder 1, %s20
      %p228 = scmp.lt.s32.totalorder %s20, 3
      %p229 = pnand %p227, %p228
      %p230 = pneg %p229
      // Predicated region
      $region33: #{tpu_custom_call.1} parent=5 // pred_check
        _
      $region34: #{tpu_custom_call.1} parent=5 // pred_check_branch
        %232 = sbr.rel (%p229) target = $region36
      $region35: #{tpu_custom_call.1} parent=5 // pred_region
        %s233 = ssub.s32 %s20, 1
        // Predicated region
        $region37: #{tpu_custom_call.1} parent=35 // pred_check
          %p234 = pneg %p41
        $region38: #{tpu_custom_call.1} parent=35 // pred_check_branch
          %236 = sbr.rel (%p234) target = $region40
        $region39: #{tpu_custom_call.1} parent=35 // pred_region
          %237 = dma.done [#allocation5], 16
        $region40: #{tpu_custom_call.1} parent=35 // pred_fallthru
          _
        %s238 = sand.u32 %s54, 1
        %s239 = scalar_lea.sflag [#allocation3], %s238
        %s240 = sand.u32 %s54, 1
        %s241 = smul.addr %s240, 8
        %s242 = scalar_lea.vmem [#allocation6], %s241
        // Predicated region
        $region41: #{tpu_custom_call.1} parent=35 // pred_check
          %p243 = pneg %p67
        $region42: #{tpu_custom_call.1} parent=35 // pred_check_branch
          %245 = sbr.rel (%p243) target = $region44
        $region43: #{tpu_custom_call.1} parent=35 // pred_region
          %246 = dma.done %s239, 128
        $region44: #{tpu_custom_call.1} parent=35 // pred_fallthru
          _
        %s247 = sand.u32 %s25, 1
        %s248 = scalar_lea.sflag [#allocation8], %s247
        %s249 = sand.u32 %s80, 1
        %s250 = smul.addr %s249, 8
        %s251 = scalar_lea.vmem [#allocation7], %s250
        // Predicated region
        $region45: #{tpu_custom_call.1} parent=35 // pred_check
          %p252 = pneg %p93
        $region46: #{tpu_custom_call.1} parent=35 // pred_check_branch
          %254 = sbr.rel (%p252) target = $region48
        $region47: #{tpu_custom_call.1} parent=35 // pred_region
          %255 = dma.done %s248, 128
        $region48: #{tpu_custom_call.1} parent=35 // pred_fallthru
          _
        %s256 = sand.u32 %s25, 1
        %s257 = scalar_lea.sflag [#allocation8], %s256
        %s258 = sand.u32 %s106, 1
        %s259 = smul.addr %s258, 8
        %s260 = scalar_lea.vmem [#allocation9], %s259
        // Predicated region
        $region49: #{tpu_custom_call.1} parent=35 // pred_check
          %p261 = pneg %p119
        $region50: #{tpu_custom_call.1} parent=35 // pred_check_branch
          %263 = sbr.rel (%p261) target = $region52
        $region51: #{tpu_custom_call.1} parent=35 // pred_region
          %264 = dma.done %s257, 128
        $region52: #{tpu_custom_call.1} parent=35 // pred_fallthru
          _
        %265 = sfence
        %p266 = pneg %p41
        %p267 = pneg %p38
        %s268 = sand.u32 %s54, 1
        %s269 = scalar_lea.sflag [#allocation3], %s268
        %s270 = sand.u32 %s54, 1
        %s271 = smul.addr %s270, 8
        %s272 = scalar_lea.vmem [#allocation6], %s271
        %p273 = pneg %p67
        %p274 = pneg %p64
        %s275 = sand.u32 %s25, 1
        %s276 = scalar_lea.sflag [#allocation8], %s275
        %s277 = sand.u32 %s80, 1
        %s278 = smul.addr %s277, 8
        %s279 = scalar_lea.vmem [#allocation7], %s278
        %p280 = pneg %p93
        %p281 = pneg %p90
        %s282 = sand.u32 %s25, 1
        %s283 = scalar_lea.sflag [#allocation8], %s282
        %s284 = sand.u32 %s106, 1
        %s285 = smul.addr %s284, 8
        %s286 = scalar_lea.vmem [#allocation9], %s285
        %p287 = pneg %p119
        %p288 = pneg %p116
        %p289 = pneg %p145
        %p290 = pneg %p142
        %s291 = sand.u32 %s132, 1
        %s292 = scalar_lea.sflag [#allocation4], %s291
        %s293 = sand.u32 %s132, 1
        %s294 = smul.addr %s293, 8
        %s295 = scalar_lea.vmem [#allocation10], %s294
        %s296 = sld [smem:[#allocation2]]
        %s297 = sld [smem:[#allocation2 + $0x1]]
        %s298 = sld [smem:[#allocation2 + $0x2]]
        %v299 = vld [vmem:[%s242] sm:$0xff]
        %v300 = vld [vmem:[%s251] sm:$0xff]
        %v301 = vld [vmem:[%s260] sm:$0xff]
        %v302 = vstv %s296
        %v303 = vmul.f32 %v302, %v299
        %v304 = vsub.f32 %v303, %v301
        %v305 = vmul.f32 %v304, %v304
        %v306 = vstv %s297
        %v307 = vmul.f32 %v306, %v300
        %v308 = vadd.f32 %v305, %v307
        %v309 = vrsqrt.pop %v308
        %v310 = vmul.f32 %v308, %v309
        %vm311 = vcmp.eq.f32.partialorder %v308, inf
        %v312 = vsel %vm311, %v308, %v310
        %vm313 = vcmp.eq.f32.partialorder %v308, 0.0
        %v314 = vand.u32 %v308, 2147483648
        %v315 = vsel %vm313, %v314, %v312
        %v316 = vadd.f32 %v304, %v315
        %v317 = vstv %s298
        %v318 = vmul.f32 %v317, %v316
        %319 = vst [vmem:[%s295] sm:$0xff] %v318
        %s320 = sand.u32 %s132, 1
        %s321 = scalar_lea.sflag [#allocation4], %s320
        %s322 = sand.u32 %s132, 1
        %s323 = smul.addr %s322, 8
        %s324 = scalar_lea.vmem [#allocation10], %s323
        // Predicated region
        $region53: #{tpu_custom_call.1} parent=35 // pred_check
          %p325 = pneg %p142
        $region54: #{tpu_custom_call.1} parent=35 // pred_check_branch
          %327 = sbr.rel (%p325) target = $region56
        $region55: #{tpu_custom_call.1} parent=35 // pred_region
          %s329 = ssub.s32 128, 128
          %330 = vsyncadd %s321, %s329
          %s331 = smul.addr %s25, 128
          %s332 = scalar_lea.hbm %s4, %s331
          %s334 = sshll.u32 %s324, 4
          %s335 = int_to_ptr.vmem [resolvable:$true] %s334
          %337 = dma.vmem_to_hbm [thread:$0]  %s335, 128, %s332, %s321
        $region56: #{tpu_custom_call.1} parent=35 // pred_fallthru
          _
      $region36: #{tpu_custom_call.1} parent=5 // pred_fallthru
        _
      %p338 = scmp.le.s32.totalorder 2, %s20
      // Predicated region
      $region57: #{tpu_custom_call.1} parent=5 // pred_check
        %p339 = pneg %p338
      $region58: #{tpu_custom_call.1} parent=5 // pred_check_branch
        %341 = sbr.rel (%p339) target = $region60
      $region59: #{tpu_custom_call.1} parent=5 // pred_region
        %s342 = ssub.s32 %s20, 2
        // Predicated region
        $region61: #{tpu_custom_call.1} parent=59 // pred_check
          %p343 = pneg %p148
        $region62: #{tpu_custom_call.1} parent=59 // pred_check_branch
          %345 = sbr.rel (%p343) target = $region64
        $region63: #{tpu_custom_call.1} parent=59 // pred_region
          %s346 = sand.u32 %s133, 1
          %s347 = scalar_lea.sflag [#allocation4], %s346
          %s348 = sand.u32 %s133, 1
          %s349 = smul.addr %s348, 8
          %s350 = scalar_lea.vmem [#allocation10], %s349
          %351 = dma.done %s347, 128
        $region64: #{tpu_custom_call.1} parent=59 // pred_fallthru
          _
      $region60: #{tpu_custom_call.1} parent=5 // pred_fallthru
        _
    $region6: #{tpu_custom_call.1} parent=1 // loop_footer
      %s24 = sadd.s32 1, %s20
    $region7: #{tpu_custom_call.1} parent=1 // loop_footer_branch
      %19 = sbr.rel target = $region3
    $region8: #{tpu_custom_call.1} parent=1 // loop_exit
      _
    %352 = vsyncpa [#allocation3], 1
    %s353 = scalar_lea.sflag [#allocation3], 1
    %354 = vsyncpa %s353, 1
    %355 = vsyncpa [#allocation8], 1
    %s356 = scalar_lea.sflag [#allocation8], 1
    %357 = vsyncpa %s356, 1
    %358 = vsyncpa [#allocation4], 1
    %s359 = scalar_lea.sflag [#allocation4], 1
    %360 = vsyncpa %s359, 1
    %361 = vsyncpa [#allocation5], 1
    %s362 = scalar_lea.sflag [#allocation5], 1
    %363 = vsyncpa %s362, 1

</llo_original>
